<compile_context>
chip_gen: v6e
topology: v6e:2x2x1
jax: 0.10.0
libtpu: 0.0.40
codegen_flags: <defaults>
</compile_context>

<pallas_src>
import math

import jax
import jax.numpy as jnp
import numpy as np
from jax.experimental import pallas as pl
from jax.experimental.pallas import tpu as pltpu

# ---- small config (consistent with the module's shapes) -------------------
B_BATCH = 2
T_SEQ = 8
N_EMBED = 32
N_HEAD = 4
HEAD_DIM = N_EMBED // N_HEAD
LN_EPS = 1e-5
NEG_INF = -1e30


def _layernorm(v, g, b):
    # var = E[x^2] - mu^2: two independent lane reductions (overlap on XLUs)
    mu = jnp.mean(v, axis=-1, keepdims=True)
    ms = jnp.mean(v * v, axis=-1, keepdims=True)
    var = ms - mu * mu
    return (v - mu) * jax.lax.rsqrt(var + LN_EPS) * g + b


def _gelu_tanh(h):
    c0 = math.sqrt(2.0 / math.pi)
    return 0.5 * h * (1.0 + jnp.tanh(c0 * (h + 0.044715 * h * h * h)))


# --------------------------------- kernel ----------------------------------
def block_kernel(x_ref, attn_bias_ref, head_mask_ref,
                 ln1_g_ref, ln1_b_ref,
                 w_attn_ref, b_attn_ref,
                 w_aproj_ref, b_aproj_ref,
                 ln2_g_ref, ln2_b_ref,
                 w_fc_ref, b_fc_ref,
                 w_mproj_ref, b_mproj_ref,
                 o_ref):
    x = x_ref[...]                                    # (B*T, C) f32
    BT, C = x.shape
    n_head = head_mask_ref.shape[0]
    bf16 = jnp.bfloat16

    # ---------------- attention branch ----------------
    xn = _layernorm(x, ln1_g_ref[...], ln1_b_ref[...])               # f32
    qkv = jnp.dot(xn.astype(bf16), w_attn_ref[...],
                  preferred_element_type=jnp.float32) + b_attn_ref[...]
    # 1/sqrt(head_dim) is pre-folded into the q columns of w_attn / b_attn.
    q = qkv[:, :C]
    k = qkv[:, C:2 * C]
    v = qkv[:, 2 * C:]
    k_bf = k.astype(bf16)
    bias = attn_bias_ref[...]             # (BT, BT): causal-within-batch, f32

    attn = jnp.zeros((BT, C), jnp.float32)
    for h in range(n_head):                           # static unroll (4 heads)
        hm = head_mask_ref[h:h + 1, :]                # (1, C) 0/1 f32 lane mask
        qh = (q * hm).astype(bf16)                    # zero non-head lanes
        # Full-width masked score matmul: zeroed lanes kill cross-head terms;
        # same single MXU push as a width-hd matmul would be.
        s = jnp.einsum('qd,kd->qk', qh, k_bf,
                       preferred_element_type=jnp.float32) + bias
        m = jnp.max(s, axis=-1, keepdims=True)        # f32 softmax
        p = jnp.exp(s - m)
        denom = jnp.sum(p, axis=-1, keepdims=True)
        p = (p * pl.reciprocal(denom, approx=True)).astype(bf16)
        vh = (v * hm).astype(bf16)
        # Head h only touches its own lanes, so accumulating over heads
        # reconstructs the concat without a lane-axis concatenate.
        attn = attn + jnp.dot(p, vh, preferred_element_type=jnp.float32)

    attn = jnp.dot(attn.astype(bf16), w_aproj_ref[...],
                   preferred_element_type=jnp.float32) + b_aproj_ref[...]
    y1 = x + attn

    # ---------------- MLP branch ----------------
    y1n = _layernorm(y1, ln2_g_ref[...], ln2_b_ref[...])
    hid = jnp.dot(y1n.astype(bf16), w_fc_ref[...],
                  preferred_element_type=jnp.float32) + b_fc_ref[...]
    hid = _gelu_tanh(hid)                             # f32
    mlp = jnp.dot(hid.astype(bf16), w_mproj_ref[...],
                  preferred_element_type=jnp.float32) + b_mproj_ref[...]

    o_ref[...] = y1 + mlp


# ------------------------------ host wrappers -------------------------------
def prepare_kernel_params(params, batch, seq, n_head):
    """One-time (init / weight-load time) repack of the module params:
      * fold 1/sqrt(head_dim) into the q columns of the fused QKV projection,
      * cast MXU weight operands to bf16 (biases / LN params stay f32),
      * precompute the additive (B*T, B*T) causal-within-batch mask and the
        per-head (n_head, C) 0/1 lane masks."""
    C = params["w_attn"].shape[0]
    hd = C // n_head
    scale = 1.0 / math.sqrt(hd)
    col_scale = np.concatenate([np.full(C, scale, np.float32),
                                np.ones(2 * C, np.float32)])
    w_attn = params["w_attn"] * col_scale
    b_attn = params["b_attn"] * col_scale

    rows = np.arange(batch * seq)
    same_batch = (rows[:, None] // seq) == (rows[None, :] // seq)
    causal = (rows[:, None] % seq) >= (rows[None, :] % seq)
    attn_bias = np.where(same_batch & causal, 0.0, NEG_INF).astype(np.float32)

    head_mask = ((np.arange(C)[None, :] // hd) ==
                 np.arange(n_head)[:, None]).astype(np.float32)

    bf16 = jnp.bfloat16
    return dict(
        attn_bias=jnp.asarray(attn_bias),
        head_mask=jnp.asarray(head_mask),
        ln1_g=params["ln1_g"], ln1_b=params["ln1_b"],
        w_attn=w_attn.astype(bf16), b_attn=b_attn,
        w_aproj=params["w_aproj"].astype(bf16), b_aproj=params["b_aproj"],
        ln2_g=params["ln2_g"], ln2_b=params["ln2_b"],
        w_fc=params["w_fc"].astype(bf16), b_fc=params["b_fc"],
        w_mproj=params["w_mproj"].astype(bf16), b_mproj=params["b_mproj"],
    )


KERNEL_ARG_ORDER = ("attn_bias", "head_mask",
                    "ln1_g", "ln1_b", "w_attn", "b_attn",
                    "w_aproj", "b_aproj", "ln2_g", "ln2_b",
                    "w_fc", "b_fc", "w_mproj", "b_mproj")


def block_forward(x, kparams):
    Bb, T, C = x.shape
    x2d = x.reshape(Bb * T, C)            # fold batch into the sublane axis
    args = [kparams[k] for k in KERNEL_ARG_ORDER]
    vmem = pl.BlockSpec(memory_space=pltpu.MemorySpace.VMEM)

    # Toy shape: everything resident in VMEM, single grid-free invocation.
    # TODO(synk): at real GPT-2 sizes, tile w_fc/w_mproj over the hidden dim,
    # add a 'parallel' row-tile grid axis (v7x dual TensorCores), pad C to a
    # multiple of 128, and set vmem_limit_bytes (v7x has 64 MiB VMEM).
    out2d = pl.pallas_call(
        block_kernel,
        out_shape=jax.ShapeDtypeStruct((Bb * T, C), x.dtype),
        in_specs=[vmem] * (1 + len(args)),
        out_specs=vmem,
    )(x2d, *args)
    return out2d.reshape(Bb, T, C)


# ---------------- deterministic parameter init (synthetic) -----------------
def init_params(key, n_embed):
    ks = jax.random.split(key, 4)

    def lin(k, fan_in, fan_out):
        kw, kb = jax.random.split(k)
        bound = 1.0 / math.sqrt(fan_in)
        w = jax.random.uniform(kw, (fan_in, fan_out), jnp.float32, -bound, bound)
        b = jax.random.uniform(kb, (1, fan_out), jnp.float32, -bound, bound)
        return w, b

    w_attn, b_attn = lin(ks[0], n_embed, 3 * n_embed)
    w_aproj, b_aproj = lin(ks[1], n_embed, n_embed)
    w_fc, b_fc = lin(ks[2], n_embed, 4 * n_embed)
    w_mproj, b_mproj = lin(ks[3], 4 * n_embed, n_embed)
    return dict(
        ln1_g=jnp.ones((1, n_embed), jnp.float32),
        ln1_b=jnp.zeros((1, n_embed), jnp.float32),
        w_attn=w_attn, b_attn=b_attn,
        w_aproj=w_aproj, b_aproj=b_aproj,
        ln2_g=jnp.ones((1, n_embed), jnp.float32),
        ln2_b=jnp.zeros((1, n_embed), jnp.float32),
        w_fc=w_fc, b_fc=b_fc,
        w_mproj=w_mproj, b_mproj=b_mproj,
    )


# ---------------- pure-JAX reference for correctness check -----------------
def block_ref(x, p, mm_dtype=jnp.float32):
    """PyTorch-Block semantics. With mm_dtype=bf16 it also emulates the
    kernel's bf16-operand / f32-accumulate matmuls."""
    def mm(a, w):
        return jnp.dot(a.astype(mm_dtype), w.astype(mm_dtype),
                       preferred_element_type=jnp.float32)

    B, T, C = x.shape
    nh, hd = N_HEAD, C // N_HEAD
    xn = _layernorm(x, p["ln1_g"], p["ln1_b"])
    qkv = mm(xn, p["w_attn"]) + p["b_attn"]
    q, k, v = jnp.split(qkv, 3, axis=-1)
    q = q.reshape(B, T, nh, hd).transpose(0, 2, 1, 3)
    k = k.reshape(B, T, nh, hd).transpose(0, 2, 1, 3)
    v = v.reshape(B, T, nh, hd).transpose(0, 2, 1, 3)
    s = jnp.einsum("bhqd,bhkd->bhqk", q.astype(mm_dtype), k.astype(mm_dtype),
                   preferred_element_type=jnp.float32) / math.sqrt(hd)
    mask = jnp.tril(jnp.ones((T, T), bool))
    s = jnp.where(mask, s, NEG_INF)
    pr = jax.nn.softmax(s, axis=-1)
    o = jnp.einsum("bhqk,bhkd->bhqd", pr.astype(mm_dtype), v.astype(mm_dtype),
                   preferred_element_type=jnp.float32)
    o = o.transpose(0, 2, 1, 3).reshape(B, T, C)
    y1 = x + (mm(o, p["w_aproj"]) + p["b_aproj"])
    y1n = _layernorm(y1, p["ln2_g"], p["ln2_b"])
    h = _gelu_tanh(mm(y1n, p["w_fc"]) + p["b_fc"])
    return y1 + (mm(h, p["w_mproj"]) + p["b_mproj"])


if __name__ == "__main__":
    key = jax.random.PRNGKey(0)
    kx, kp = jax.random.split(key)
    x = jax.random.normal(kx, (B_BATCH, T_SEQ, N_EMBED), jnp.float32)
    params = init_params(kp, N_EMBED)
    kparams = prepare_kernel_params(params, B_BATCH, T_SEQ, N_HEAD)

    out = jax.block_until_ready(block_forward(x, kparams))

    # Tight check vs a reference that emulates the kernel's bf16 matmul
    # operands (residual diff: approx softmax reciprocal + scale-fold rounding).
    ref_bf16 = block_ref(x, params, jnp.bfloat16)
    np.testing.assert_allclose(np.asarray(out), np.asarray(ref_bf16),
                               rtol=1.5e-2, atol=1.5e-2)
    # Loose check vs the exact-f32 PyTorch-semantics reference (diff dominated
    # by bf16 MXU-operand quantization, ~1e-2 at these magnitudes).
    ref_f32 = block_ref(x, params, jnp.float32)
    np.testing.assert_allclose(np.asarray(out), np.asarray(ref_f32),
                               rtol=5e-2, atol=5e-2)

    print("KERNEL_OK")
</pallas_src>

<mosaic_0001>
module attributes {stable_mosaic.version = 11 : i64} {
  func.func @block_kernel(%arg0: memref<16x32xf32, #tpu.memory_space<vmem>>, %arg1: memref<16x16xf32, #tpu.memory_space<vmem>>, %arg2: memref<4x32xf32, #tpu.memory_space<vmem>>, %arg3: memref<1x32xf32, #tpu.memory_space<vmem>>, %arg4: memref<1x32xf32, #tpu.memory_space<vmem>>, %arg5: memref<32x96xbf16, #tpu.memory_space<vmem>>, %arg6: memref<1x96xf32, #tpu.memory_space<vmem>>, %arg7: memref<32x32xbf16, #tpu.memory_space<vmem>>, %arg8: memref<1x32xf32, #tpu.memory_space<vmem>>, %arg9: memref<1x32xf32, #tpu.memory_space<vmem>>, %arg10: memref<1x32xf32, #tpu.memory_space<vmem>>, %arg11: memref<32x128xbf16, #tpu.memory_space<vmem>>, %arg12: memref<1x128xf32, #tpu.memory_space<vmem>>, %arg13: memref<128x32xbf16, #tpu.memory_space<vmem>>, %arg14: memref<1x32xf32, #tpu.memory_space<vmem>>, %arg15: memref<16x32xf32, #tpu.memory_space<vmem>>) attributes {dimension_semantics = [], scalar_prefetch = 0 : i64, scratch_operands = 0 : i64, tpu.core_type = #tpu.core_type<tc>} {
    %c0 = arith.constant 0 : index
    %c0_0 = arith.constant 0 : index
    %0 = vector.load %arg0[%c0, %c0_0] : memref<16x32xf32, #tpu.memory_space<vmem>>, vector<16x32xf32>
    %c0_1 = arith.constant 0 : index
    %c0_2 = arith.constant 0 : index
    %1 = vector.load %arg3[%c0_1, %c0_2] : memref<1x32xf32, #tpu.memory_space<vmem>>, vector<1x32xf32>
    %c0_3 = arith.constant 0 : index
    %c0_4 = arith.constant 0 : index
    %2 = vector.load %arg4[%c0_3, %c0_4] : memref<1x32xf32, #tpu.memory_space<vmem>>, vector<1x32xf32>
    %cst = arith.constant dense<0.000000e+00> : vector<16xf32>
    %3 = vector.multi_reduction <add>, %0, %cst [1] : vector<16x32xf32> to vector<16xf32>
    %4 = vector.shape_cast %3 : vector<16xf32> to vector<16x1xf32>
    %cst_5 = arith.constant 3.200000e+01 : f32
    %5 = vector.broadcast %cst_5 : f32 to vector<16x1xf32>
    %6 = arith.divf %4, %5 : vector<16x1xf32>
    %7 = arith.mulf %0, %0 : vector<16x32xf32>
    %cst_6 = arith.constant dense<0.000000e+00> : vector<16xf32>
    %8 = vector.multi_reduction <add>, %7, %cst_6 [1] : vector<16x32xf32> to vector<16xf32>
    %9 = vector.shape_cast %8 : vector<16xf32> to vector<16x1xf32>
    %cst_7 = arith.constant 3.200000e+01 : f32
    %10 = vector.broadcast %cst_7 : f32 to vector<16x1xf32>
    %11 = arith.divf %9, %10 : vector<16x1xf32>
    %12 = arith.mulf %6, %6 : vector<16x1xf32>
    %13 = arith.subf %11, %12 : vector<16x1xf32>
    %14 = vector.broadcast %6 : vector<16x1xf32> to vector<16x32xf32>
    %15 = arith.subf %0, %14 : vector<16x32xf32>
    %cst_8 = arith.constant 9.99999974E-6 : f32
    %16 = vector.broadcast %cst_8 : f32 to vector<16x1xf32>
    %17 = arith.addf %13, %16 : vector<16x1xf32>
    %18 = math.rsqrt %17 : vector<16x1xf32>
    %19 = vector.broadcast %18 : vector<16x1xf32> to vector<16x32xf32>
    %20 = arith.mulf %15, %19 : vector<16x32xf32>
    %21 = vector.broadcast %1 : vector<1x32xf32> to vector<16x32xf32>
    %22 = arith.mulf %20, %21 : vector<16x32xf32>
    %23 = vector.broadcast %2 : vector<1x32xf32> to vector<16x32xf32>
    %24 = arith.addf %22, %23 : vector<16x32xf32>
    %25 = arith.truncf %24 : vector<16x32xf32> to vector<16x32xbf16>
    %c0_9 = arith.constant 0 : index
    %c0_10 = arith.constant 0 : index
    %26 = vector.load %arg5[%c0_9, %c0_10] : memref<32x96xbf16, #tpu.memory_space<vmem>>, vector<32x96xbf16>
    %cst_11 = arith.constant dense<0.000000e+00> : vector<16x96xf32>
    %27 = tpu.matmul %25, %26, %cst_11 {dimension_numbers = #tpu.dot_dimension_numbers<[1], [0], [0], [1], [0, 0, 1, 1], [], []>} : vector<16x32xbf16>, vector<32x96xbf16>, vector<16x96xf32> -> vector<16x96xf32>
    %c0_12 = arith.constant 0 : index
    %c0_13 = arith.constant 0 : index
    %28 = vector.load %arg6[%c0_12, %c0_13] : memref<1x96xf32, #tpu.memory_space<vmem>>, vector<1x96xf32>
    %29 = vector.broadcast %28 : vector<1x96xf32> to vector<16x96xf32>
    %30 = arith.addf %27, %29 : vector<16x96xf32>
    %31 = vector.extract_strided_slice %30 {offsets = [0, 0], sizes = [16, 32], strides = [1, 1]} : vector<16x96xf32> to vector<16x32xf32>
    %32 = vector.extract_strided_slice %30 {offsets = [0, 32], sizes = [16, 32], strides = [1, 1]} : vector<16x96xf32> to vector<16x32xf32>
    %33 = vector.extract_strided_slice %30 {offsets = [0, 64], sizes = [16, 32], strides = [1, 1]} : vector<16x96xf32> to vector<16x32xf32>
    %34 = arith.truncf %32 : vector<16x32xf32> to vector<16x32xbf16>
    %c0_14 = arith.constant 0 : index
    %c0_15 = arith.constant 0 : index
    %35 = vector.load %arg1[%c0_14, %c0_15] : memref<16x16xf32, #tpu.memory_space<vmem>>, vector<16x16xf32>
    %cst_16 = arith.constant 0.000000e+00 : f32
    %36 = vector.broadcast %cst_16 : f32 to vector<16x32xf32>
    %c0_17 = arith.constant 0 : index
    %c0_18 = arith.constant 0 : index
    %37 = vector.load %arg2[%c0_17, %c0_18] : memref<4x32xf32, #tpu.memory_space<vmem>>, vector<1x32xf32>
    %38 = vector.broadcast %37 : vector<1x32xf32> to vector<16x32xf32>
    %39 = arith.mulf %31, %38 : vector<16x32xf32>
    %40 = arith.truncf %39 : vector<16x32xf32> to vector<16x32xbf16>
    "tpu.trace_start"() <{level = 10 : i32, message = "qd,kd->qk"}> : () -> ()
    %cst_19 = arith.constant dense<0.000000e+00> : vector<16x16xf32>
    %41 = tpu.matmul %40, %34, %cst_19 {dimension_numbers = #tpu.dot_dimension_numbers<[1], [1], [0], [0], [0, 0, 1, 0], [], []>} : vector<16x32xbf16>, vector<16x32xbf16>, vector<16x16xf32> -> vector<16x16xf32>
    "tpu.trace_stop"() : () -> ()
    %42 = arith.addf %41, %35 : vector<16x16xf32>
    %cst_20 = arith.constant dense<0xFF800000> : vector<16xf32>
    %43 = vector.multi_reduction <maximumf>, %42, %cst_20 [1] : vector<16x16xf32> to vector<16xf32>
    %44 = vector.shape_cast %43 : vector<16xf32> to vector<16x1xf32>
    %45 = vector.broadcast %44 : vector<16x1xf32> to vector<16x16xf32>
    %46 = arith.subf %42, %45 : vector<16x16xf32>
    %47 = math.exp %46 : vector<16x16xf32>
    %cst_21 = arith.constant dense<0.000000e+00> : vector<16xf32>
    %48 = vector.multi_reduction <add>, %47, %cst_21 [1] : vector<16x16xf32> to vector<16xf32>
    %49 = vector.shape_cast %48 : vector<16xf32> to vector<16x1xf32>
    %50 = tpu.reciprocal %49 {approx = true} : vector<16x1xf32> -> vector<16x1xf32>
    %51 = vector.broadcast %50 : vector<16x1xf32> to vector<16x16xf32>
    %52 = arith.mulf %47, %51 : vector<16x16xf32>
    %53 = arith.truncf %52 : vector<16x16xf32> to vector<16x16xbf16>
    %54 = vector.broadcast %37 : vector<1x32xf32> to vector<16x32xf32>
    %55 = arith.mulf %33, %54 : vector<16x32xf32>
    %56 = arith.truncf %55 : vector<16x32xf32> to vector<16x32xbf16>
    %cst_22 = arith.constant dense<0.000000e+00> : vector<16x32xf32>
    %57 = tpu.matmul %53, %56, %cst_22 {dimension_numbers = #tpu.dot_dimension_numbers<[1], [0], [0], [1], [0, 0, 1, 1], [], []>} : vector<16x16xbf16>, vector<16x32xbf16>, vector<16x32xf32> -> vector<16x32xf32>
    %58 = arith.addf %36, %57 : vector<16x32xf32>
    %c1 = arith.constant 1 : index
    %c0_23 = arith.constant 0 : index
    %59 = vector.load %arg2[%c1, %c0_23] : memref<4x32xf32, #tpu.memory_space<vmem>>, vector<1x32xf32>
    %60 = vector.broadcast %59 : vector<1x32xf32> to vector<16x32xf32>
    %61 = arith.mulf %31, %60 : vector<16x32xf32>
    %62 = arith.truncf %61 : vector<16x32xf32> to vector<16x32xbf16>
    "tpu.trace_start"() <{level = 10 : i32, message = "qd,kd->qk"}> : () -> ()
    %cst_24 = arith.constant dense<0.000000e+00> : vector<16x16xf32>
    %63 = tpu.matmul %62, %34, %cst_24 {dimension_numbers = #tpu.dot_dimension_numbers<[1], [1], [0], [0], [0, 0, 1, 0], [], []>} : vector<16x32xbf16>, vector<16x32xbf16>, vector<16x16xf32> -> vector<16x16xf32>
    "tpu.trace_stop"() : () -> ()
    %64 = arith.addf %63, %35 : vector<16x16xf32>
    %cst_25 = arith.constant dense<0xFF800000> : vector<16xf32>
    %65 = vector.multi_reduction <maximumf>, %64, %cst_25 [1] : vector<16x16xf32> to vector<16xf32>
    %66 = vector.shape_cast %65 : vector<16xf32> to vector<16x1xf32>
    %67 = vector.broadcast %66 : vector<16x1xf32> to vector<16x16xf32>
    %68 = arith.subf %64, %67 : vector<16x16xf32>
    %69 = math.exp %68 : vector<16x16xf32>
    %cst_26 = arith.constant dense<0.000000e+00> : vector<16xf32>
    %70 = vector.multi_reduction <add>, %69, %cst_26 [1] : vector<16x16xf32> to vector<16xf32>
    %71 = vector.shape_cast %70 : vector<16xf32> to vector<16x1xf32>
    %72 = tpu.reciprocal %71 {approx = true} : vector<16x1xf32> -> vector<16x1xf32>
    %73 = vector.broadcast %72 : vector<16x1xf32> to vector<16x16xf32>
    %74 = arith.mulf %69, %73 : vector<16x16xf32>
    %75 = arith.truncf %74 : vector<16x16xf32> to vector<16x16xbf16>
    %76 = vector.broadcast %59 : vector<1x32xf32> to vector<16x32xf32>
    %77 = arith.mulf %33, %76 : vector<16x32xf32>
    %78 = arith.truncf %77 : vector<16x32xf32> to vector<16x32xbf16>
    %cst_27 = arith.constant dense<0.000000e+00> : vector<16x32xf32>
    %79 = tpu.matmul %75, %78, %cst_27 {dimension_numbers = #tpu.dot_dimension_numbers<[1], [0], [0], [1], [0, 0, 1, 1], [], []>} : vector<16x16xbf16>, vector<16x32xbf16>, vector<16x32xf32> -> vector<16x32xf32>
    %80 = arith.addf %58, %79 : vector<16x32xf32>
    %c2 = arith.constant 2 : index
    %c0_28 = arith.constant 0 : index
    %81 = vector.load %arg2[%c2, %c0_28] : memref<4x32xf32, #tpu.memory_space<vmem>>, vector<1x32xf32>
    %82 = vector.broadcast %81 : vector<1x32xf32> to vector<16x32xf32>
    %83 = arith.mulf %31, %82 : vector<16x32xf32>
    %84 = arith.truncf %83 : vector<16x32xf32> to vector<16x32xbf16>
    "tpu.trace_start"() <{level = 10 : i32, message = "qd,kd->qk"}> : () -> ()
    %cst_29 = arith.constant dense<0.000000e+00> : vector<16x16xf32>
    %85 = tpu.matmul %84, %34, %cst_29 {dimension_numbers = #tpu.dot_dimension_numbers<[1], [1], [0], [0], [0, 0, 1, 0], [], []>} : vector<16x32xbf16>, vector<16x32xbf16>, vector<16x16xf32> -> vector<16x16xf32>
    "tpu.trace_stop"() : () -> ()
    %86 = arith.addf %85, %35 : vector<16x16xf32>
    %cst_30 = arith.constant dense<0xFF800000> : vector<16xf32>
    %87 = vector.multi_reduction <maximumf>, %86, %cst_30 [1] : vector<16x16xf32> to vector<16xf32>
    %88 = vector.shape_cast %87 : vector<16xf32> to vector<16x1xf32>
    %89 = vector.broadcast %88 : vector<16x1xf32> to vector<16x16xf32>
    %90 = arith.subf %86, %89 : vector<16x16xf32>
    %91 = math.exp %90 : vector<16x16xf32>
    %cst_31 = arith.constant dense<0.000000e+00> : vector<16xf32>
    %92 = vector.multi_reduction <add>, %91, %cst_31 [1] : vector<16x16xf32> to vector<16xf32>
    %93 = vector.shape_cast %92 : vector<16xf32> to vector<16x1xf32>
    %94 = tpu.reciprocal %93 {approx = true} : vector<16x1xf32> -> vector<16x1xf32>
    %95 = vector.broadcast %94 : vector<16x1xf32> to vector<16x16xf32>
    %96 = arith.mulf %91, %95 : vector<16x16xf32>
    %97 = arith.truncf %96 : vector<16x16xf32> to vector<16x16xbf16>
    %98 = vector.broadcast %81 : vector<1x32xf32> to vector<16x32xf32>
    %99 = arith.mulf %33, %98 : vector<16x32xf32>
    %100 = arith.truncf %99 : vector<16x32xf32> to vector<16x32xbf16>
    %cst_32 = arith.constant dense<0.000000e+00> : vector<16x32xf32>
    %101 = tpu.matmul %97, %100, %cst_32 {dimension_numbers = #tpu.dot_dimension_numbers<[1], [0], [0], [1], [0, 0, 1, 1], [], []>} : vector<16x16xbf16>, vector<16x32xbf16>, vector<16x32xf32> -> vector<16x32xf32>
    %102 = arith.addf %80, %101 : vector<16x32xf32>
    %c3 = arith.constant 3 : index
    %c0_33 = arith.constant 0 : index
    %103 = vector.load %arg2[%c3, %c0_33] : memref<4x32xf32, #tpu.memory_space<vmem>>, vector<1x32xf32>
    %104 = vector.broadcast %103 : vector<1x32xf32> to vector<16x32xf32>
    %105 = arith.mulf %31, %104 : vector<16x32xf32>
    %106 = arith.truncf %105 : vector<16x32xf32> to vector<16x32xbf16>
    "tpu.trace_start"() <{level = 10 : i32, message = "qd,kd->qk"}> : () -> ()
    %cst_34 = arith.constant dense<0.000000e+00> : vector<16x16xf32>
    %107 = tpu.matmul %106, %34, %cst_34 {dimension_numbers = #tpu.dot_dimension_numbers<[1], [1], [0], [0], [0, 0, 1, 0], [], []>} : vector<16x32xbf16>, vector<16x32xbf16>, vector<16x16xf32> -> vector<16x16xf32>
    "tpu.trace_stop"() : () -> ()
    %108 = arith.addf %107, %35 : vector<16x16xf32>
    %cst_35 = arith.constant dense<0xFF800000> : vector<16xf32>
    %109 = vector.multi_reduction <maximumf>, %108, %cst_35 [1] : vector<16x16xf32> to vector<16xf32>
    %110 = vector.shape_cast %109 : vector<16xf32> to vector<16x1xf32>
    %111 = vector.broadcast %110 : vector<16x1xf32> to vector<16x16xf32>
    %112 = arith.subf %108, %111 : vector<16x16xf32>
    %113 = math.exp %112 : vector<16x16xf32>
    %cst_36 = arith.constant dense<0.000000e+00> : vector<16xf32>
    %114 = vector.multi_reduction <add>, %113, %cst_36 [1] : vector<16x16xf32> to vector<16xf32>
    %115 = vector.shape_cast %114 : vector<16xf32> to vector<16x1xf32>
    %116 = tpu.reciprocal %115 {approx = true} : vector<16x1xf32> -> vector<16x1xf32>
    %117 = vector.broadcast %116 : vector<16x1xf32> to vector<16x16xf32>
    %118 = arith.mulf %113, %117 : vector<16x16xf32>
    %119 = arith.truncf %118 : vector<16x16xf32> to vector<16x16xbf16>
    %120 = vector.broadcast %103 : vector<1x32xf32> to vector<16x32xf32>
    %121 = arith.mulf %33, %120 : vector<16x32xf32>
    %122 = arith.truncf %121 : vector<16x32xf32> to vector<16x32xbf16>
    %cst_37 = arith.constant dense<0.000000e+00> : vector<16x32xf32>
    %123 = tpu.matmul %119, %122, %cst_37 {dimension_numbers = #tpu.dot_dimension_numbers<[1], [0], [0], [1], [0, 0, 1, 1], [], []>} : vector<16x16xbf16>, vector<16x32xbf16>, vector<16x32xf32> -> vector<16x32xf32>
    %124 = arith.addf %102, %123 : vector<16x32xf32>
    %125 = arith.truncf %124 : vector<16x32xf32> to vector<16x32xbf16>
    %c0_38 = arith.constant 0 : index
    %c0_39 = arith.constant 0 : index
    %126 = vector.load %arg7[%c0_38, %c0_39] : memref<32x32xbf16, #tpu.memory_space<vmem>>, vector<32x32xbf16>
    %cst_40 = arith.constant dense<0.000000e+00> : vector<16x32xf32>
    %127 = tpu.matmul %125, %126, %cst_40 {dimension_numbers = #tpu.dot_dimension_numbers<[1], [0], [0], [1], [0, 0, 1, 1], [], []>} : vector<16x32xbf16>, vector<32x32xbf16>, vector<16x32xf32> -> vector<16x32xf32>
    %c0_41 = arith.constant 0 : index
    %c0_42 = arith.constant 0 : index
    %128 = vector.load %arg8[%c0_41, %c0_42] : memref<1x32xf32, #tpu.memory_space<vmem>>, vector<1x32xf32>
    %129 = vector.broadcast %128 : vector<1x32xf32> to vector<16x32xf32>
    %130 = arith.addf %127, %129 : vector<16x32xf32>
    %131 = arith.addf %0, %130 : vector<16x32xf32>
    %c0_43 = arith.constant 0 : index
    %c0_44 = arith.constant 0 : index
    %132 = vector.load %arg9[%c0_43, %c0_44] : memref<1x32xf32, #tpu.memory_space<vmem>>, vector<1x32xf32>
    %c0_45 = arith.constant 0 : index
    %c0_46 = arith.constant 0 : index
    %133 = vector.load %arg10[%c0_45, %c0_46] : memref<1x32xf32, #tpu.memory_space<vmem>>, vector<1x32xf32>
    %cst_47 = arith.constant dense<0.000000e+00> : vector<16xf32>
    %134 = vector.multi_reduction <add>, %131, %cst_47 [1] : vector<16x32xf32> to vector<16xf32>
    %135 = vector.shape_cast %134 : vector<16xf32> to vector<16x1xf32>
    %cst_48 = arith.constant 3.200000e+01 : f32
    %136 = vector.broadcast %cst_48 : f32 to vector<16x1xf32>
    %137 = arith.divf %135, %136 : vector<16x1xf32>
    %138 = arith.mulf %131, %131 : vector<16x32xf32>
    %cst_49 = arith.constant dense<0.000000e+00> : vector<16xf32>
    %139 = vector.multi_reduction <add>, %138, %cst_49 [1] : vector<16x32xf32> to vector<16xf32>
    %140 = vector.shape_cast %139 : vector<16xf32> to vector<16x1xf32>
    %cst_50 = arith.constant 3.200000e+01 : f32
    %141 = vector.broadcast %cst_50 : f32 to vector<16x1xf32>
    %142 = arith.divf %140, %141 : vector<16x1xf32>
    %143 = arith.mulf %137, %137 : vector<16x1xf32>
    %144 = arith.subf %142, %143 : vector<16x1xf32>
    %145 = vector.broadcast %137 : vector<16x1xf32> to vector<16x32xf32>
    %146 = arith.subf %131, %145 : vector<16x32xf32>
    %cst_51 = arith.constant 9.99999974E-6 : f32
    %147 = vector.broadcast %cst_51 : f32 to vector<16x1xf32>
    %148 = arith.addf %144, %147 : vector<16x1xf32>
    %149 = math.rsqrt %148 : vector<16x1xf32>
    %150 = vector.broadcast %149 : vector<16x1xf32> to vector<16x32xf32>
    %151 = arith.mulf %146, %150 : vector<16x32xf32>
    %152 = vector.broadcast %132 : vector<1x32xf32> to vector<16x32xf32>
    %153 = arith.mulf %151, %152 : vector<16x32xf32>
    %154 = vector.broadcast %133 : vector<1x32xf32> to vector<16x32xf32>
    %155 = arith.addf %153, %154 : vector<16x32xf32>
    %156 = arith.truncf %155 : vector<16x32xf32> to vector<16x32xbf16>
    %c0_52 = arith.constant 0 : index
    %c0_53 = arith.constant 0 : index
    %157 = vector.load %arg11[%c0_52, %c0_53] : memref<32x128xbf16, #tpu.memory_space<vmem>>, vector<32x128xbf16>
    %cst_54 = arith.constant dense<0.000000e+00> : vector<16x128xf32>
    %158 = tpu.matmul %156, %157, %cst_54 {dimension_numbers = #tpu.dot_dimension_numbers<[1], [0], [0], [1], [0, 0, 1, 1], [], []>} : vector<16x32xbf16>, vector<32x128xbf16>, vector<16x128xf32> -> vector<16x128xf32>
    %c0_55 = arith.constant 0 : index
    %c0_56 = arith.constant 0 : index
    %159 = vector.load %arg12[%c0_55, %c0_56] : memref<1x128xf32, #tpu.memory_space<vmem>>, vector<1x128xf32>
    %160 = vector.broadcast %159 : vector<1x128xf32> to vector<16x128xf32>
    %161 = arith.addf %158, %160 : vector<16x128xf32>
    %cst_57 = arith.constant 5.000000e-01 : f32
    %162 = vector.broadcast %cst_57 : f32 to vector<16x128xf32>
    %163 = arith.mulf %162, %161 : vector<16x128xf32>
    %cst_58 = arith.constant 4.471500e-02 : f32
    %164 = vector.broadcast %cst_58 : f32 to vector<16x128xf32>
    %165 = arith.mulf %164, %161 : vector<16x128xf32>
    %166 = arith.mulf %165, %161 : vector<16x128xf32>
    %167 = arith.mulf %166, %161 : vector<16x128xf32>
    %168 = arith.addf %161, %167 : vector<16x128xf32>
    %cst_59 = arith.constant 0.797884583 : f32
    %169 = vector.broadcast %cst_59 : f32 to vector<16x128xf32>
    %170 = arith.mulf %169, %168 : vector<16x128xf32>
    %171 = math.tanh %170 : vector<16x128xf32>
    %cst_60 = arith.constant 1.000000e+00 : f32
    %172 = vector.broadcast %cst_60 : f32 to vector<16x128xf32>
    %173 = arith.addf %172, %171 : vector<16x128xf32>
    %174 = arith.mulf %163, %173 : vector<16x128xf32>
    %175 = arith.truncf %174 : vector<16x128xf32> to vector<16x128xbf16>
    %c0_61 = arith.constant 0 : index
    %c0_62 = arith.constant 0 : index
    %176 = vector.load %arg13[%c0_61, %c0_62] : memref<128x32xbf16, #tpu.memory_space<vmem>>, vector<128x32xbf16>
    %cst_63 = arith.constant dense<0.000000e+00> : vector<16x32xf32>
    %177 = tpu.matmul %175, %176, %cst_63 {dimension_numbers = #tpu.dot_dimension_numbers<[1], [0], [0], [1], [0, 0, 1, 1], [], []>} : vector<16x128xbf16>, vector<128x32xbf16>, vector<16x32xf32> -> vector<16x32xf32>
    %c0_64 = arith.constant 0 : index
    %c0_65 = arith.constant 0 : index
    %178 = vector.load %arg14[%c0_64, %c0_65] : memref<1x32xf32, #tpu.memory_space<vmem>>, vector<1x32xf32>
    %179 = vector.broadcast %178 : vector<1x32xf32> to vector<16x32xf32>
    %180 = arith.addf %177, %179 : vector<16x32xf32>
    %181 = arith.addf %131, %180 : vector<16x32xf32>
    %c0_66 = arith.constant 0 : index
    %c0_67 = arith.constant 0 : index
    %182 = vector.load %arg15[%c0_66, %c0_67] : memref<16x32xf32, #tpu.memory_space<vmem>>, vector<16x32xf32>
    tpu.vector_store %arg15[%c0_66, %c0_67], %181 {strides = array<i32>} : memref<16x32xf32, #tpu.memory_space<vmem>>, vector<16x32xf32>,
    return
  }
}

</mosaic_0001>

<llo_original>
// kernel: tpu_custom_call.1
$region0: #{tpu_custom_call.1}
  #allocation0 [shape = 'u32[]', space=smem, size = 0x4, offset = 0x4, fixed_abs, tag = 'smem constant byte address 0x4 - core index']
  #allocation1 [shape = 'u32[144,128]{1,0:T(1,128)}', space=vmem, size = 0x12000, scoped, tag = 'internal scratch']
  %s0 = inlined_call_operand.vmem [shape: f32[16,32], index: 0, kind: input, shape index: {}]
  %s1 = inlined_call_operand.vmem [shape: f32[16,16], index: 1, kind: input, shape index: {}]
  %s2 = inlined_call_operand.hbm [shape: f32[4,32], index: 2, kind: input, shape index: {}]
  %s3 = inlined_call_operand.vmem [shape: f32[1,32], index: 3, kind: input, shape index: {}]
  %s4 = inlined_call_operand.vmem [shape: f32[1,32], index: 4, kind: input, shape index: {}]
  %s5 = inlined_call_operand.vmem [shape: bf16[32,96], index: 5, kind: input, shape index: {}]
  %s6 = inlined_call_operand.vmem [shape: f32[1,96], index: 6, kind: input, shape index: {}]
  %s7 = inlined_call_operand.vmem [shape: bf16[32,32], index: 7, kind: input, shape index: {}]
  %s8 = inlined_call_operand.vmem [shape: f32[1,32], index: 8, kind: input, shape index: {}]
  %s9 = inlined_call_operand.vmem [shape: f32[1,32], index: 9, kind: input, shape index: {}]
  %s10 = inlined_call_operand.vmem [shape: f32[1,32], index: 10, kind: input, shape index: {}]
  %s11 = inlined_call_operand.vmem [shape: bf16[32,128], index: 11, kind: input, shape index: {}]
  %s12 = inlined_call_operand.vmem [shape: f32[1,128], index: 12, kind: input, shape index: {}]
  %s13 = inlined_call_operand.vmem [shape: bf16[128,32], index: 13, kind: input, shape index: {}]
  %s14 = inlined_call_operand.vmem [shape: f32[1,32], index: 14, kind: input, shape index: {}]
  %s15 = inlined_call_operand.hbm [shape: f32[16,32], index: 15, kind: output, shape index: {}]
  %s16 = sld [smem:[#allocation0]]
  $region74: #{tpu_custom_call.1} parent=0
    _
  %s18 = ssub.s32 1, %s16
  %s19 = scalar_select 0, %s18, %s16
  $region1: #{tpu_custom_call.1} parent=0
    #allocation2 [shape = 'u8[2048]{0}', space=vmem, size = 0x800, scoped, tag = 'input window, operand 2, single buffered']
    #allocation3 [shape = 's32[1]{0}', space=sflag, size = 0x4, scoped, tag = 'scoped memory for tpu_custom_call.1']
    #allocation4 [shape = 's32[1]{0}', space=sflag, size = 0x4, scoped, tag = 'scoped memory for tpu_custom_call.1']
    #allocation5 [shape = 'u8[8192]{0}', space=vmem, size = 0x2000, scoped, tag = 'output window, operand 0, single buffered']
    %20 = vsyncpa [#allocation3], 0
    %21 = vsyncpa [#allocation4], 0
    // Predicated region
    $region2: #{tpu_custom_call.1} parent=1 // pred_check
      _
    $region3: #{tpu_custom_call.1} parent=1 // pred_check_branch
      %23 = sbr.rel (0) target = $region5
    $region4: #{tpu_custom_call.1} parent=1 // pred_region
      _
    $region5: #{tpu_custom_call.1} parent=1 // pred_fallthru
      _
    // Predicated region
    $region6: #{tpu_custom_call.1} parent=1 // pred_check
      _
    $region7: #{tpu_custom_call.1} parent=1 // pred_check_branch
      %25 = sbr.rel (0) target = $region9
    $region8: #{tpu_custom_call.1} parent=1 // pred_region
      _
    $region9: #{tpu_custom_call.1} parent=1 // pred_fallthru
      _
    // Predicated region
    $region10: #{tpu_custom_call.1} parent=1 // pred_check
      _
    $region11: #{tpu_custom_call.1} parent=1 // pred_check_branch
      %27 = sbr.rel (0) target = $region13
    $region12: #{tpu_custom_call.1} parent=1 // pred_region
      %s29 = ssub.s32 64, 64
      %30 = vsyncadd [#allocation3], %s29
      %s32 = sshll.u32 [#allocation2], 4
      %s33 = int_to_ptr.vmem [resolvable:$true] %s32
      %35 = dma.hbm_to_vmem [thread:$0]  %s2, 64, %s33, [#allocation3]
    $region13: #{tpu_custom_call.1} parent=1 // pred_fallthru
      _
    // Predicated region
    $region14: #{tpu_custom_call.1} parent=1 // pred_check
      _
    $region15: #{tpu_custom_call.1} parent=1 // pred_check_branch
      %37 = sbr.rel (0) target = $region17
    $region16: #{tpu_custom_call.1} parent=1 // pred_region
      _
    $region17: #{tpu_custom_call.1} parent=1 // pred_fallthru
      _
    // Predicated region
    $region18: #{tpu_custom_call.1} parent=1 // pred_check
      _
    $region19: #{tpu_custom_call.1} parent=1 // pred_check_branch
      %39 = sbr.rel (0) target = $region21
    $region20: #{tpu_custom_call.1} parent=1 // pred_region
      _
    $region21: #{tpu_custom_call.1} parent=1 // pred_fallthru
      _
    // Predicated region
    $region22: #{tpu_custom_call.1} parent=1 // pred_check
      _
    $region23: #{tpu_custom_call.1} parent=1 // pred_check_branch
      %41 = sbr.rel (0) target = $region25
    $region24: #{tpu_custom_call.1} parent=1 // pred_region
      _
    $region25: #{tpu_custom_call.1} parent=1 // pred_fallthru
      _
    // Predicated region
    $region26: #{tpu_custom_call.1} parent=1 // pred_check
      _
    $region27: #{tpu_custom_call.1} parent=1 // pred_check_branch
      %43 = sbr.rel (0) target = $region29
    $region28: #{tpu_custom_call.1} parent=1 // pred_region
      _
    $region29: #{tpu_custom_call.1} parent=1 // pred_fallthru
      _
    // Predicated region
    $region30: #{tpu_custom_call.1} parent=1 // pred_check
      _
    $region31: #{tpu_custom_call.1} parent=1 // pred_check_branch
      %45 = sbr.rel (0) target = $region33
    $region32: #{tpu_custom_call.1} parent=1 // pred_region
      _
    $region33: #{tpu_custom_call.1} parent=1 // pred_fallthru
      _
    // Predicated region
    $region34: #{tpu_custom_call.1} parent=1 // pred_check
      _
    $region35: #{tpu_custom_call.1} parent=1 // pred_check_branch
      %47 = sbr.rel (0) target = $region37
    $region36: #{tpu_custom_call.1} parent=1 // pred_region
      _
    $region37: #{tpu_custom_call.1} parent=1 // pred_fallthru
      _
    // Predicated region
    $region38: #{tpu_custom_call.1} parent=1 // pred_check
      _
    $region39: #{tpu_custom_call.1} parent=1 // pred_check_branch
      %49 = sbr.rel (0) target = $region41
    $region40: #{tpu_custom_call.1} parent=1 // pred_region
      _
    $region41: #{tpu_custom_call.1} parent=1 // pred_fallthru
      _
    // Predicated region
    $region42: #{tpu_custom_call.1} parent=1 // pred_check
      _
    $region43: #{tpu_custom_call.1} parent=1 // pred_check_branch
      %51 = sbr.rel (0) target = $region45
    $region44: #{tpu_custom_call.1} parent=1 // pred_region
      _
    $region45: #{tpu_custom_call.1} parent=1 // pred_fallthru
      _
    // Predicated region
    $region46: #{tpu_custom_call.1} parent=1 // pred_check
      _
    $region47: #{tpu_custom_call.1} parent=1 // pred_check_branch
      %53 = sbr.rel (0) target = $region49
    $region48: #{tpu_custom_call.1} parent=1 // pred_region
      _
    $region49: #{tpu_custom_call.1} parent=1 // pred_fallthru
      _
    // Predicated region
    $region50: #{tpu_custom_call.1} parent=1 // pred_check
      _
    $region51: #{tpu_custom_call.1} parent=1 // pred_check_branch
      %55 = sbr.rel (0) target = $region53
    $region52: #{tpu_custom_call.1} parent=1 // pred_region
      _
    $region53: #{tpu_custom_call.1} parent=1 // pred_fallthru
      _
    // Predicated region
    $region54: #{tpu_custom_call.1} parent=1 // pred_check
      _
    $region55: #{tpu_custom_call.1} parent=1 // pred_check_branch
      %57 = sbr.rel (0) target = $region57
    $region56: #{tpu_custom_call.1} parent=1 // pred_region
      _
    $region57: #{tpu_custom_call.1} parent=1 // pred_fallthru
      _
    // Predicated region
    $region58: #{tpu_custom_call.1} parent=1 // pred_check
      _
    $region59: #{tpu_custom_call.1} parent=1 // pred_check_branch
      %59 = sbr.rel (0) target = $region61
    $region60: #{tpu_custom_call.1} parent=1 // pred_region
      _
    $region61: #{tpu_custom_call.1} parent=1 // pred_fallthru
      _
    // Predicated region
    $region62: #{tpu_custom_call.1} parent=1 // pred_check
      _
    $region63: #{tpu_custom_call.1} parent=1 // pred_check_branch
      %61 = sbr.rel (0) target = $region65
    $region64: #{tpu_custom_call.1} parent=1 // pred_region
      %62 = dma.done [#allocation3], 64
    $region65: #{tpu_custom_call.1} parent=1 // pred_fallthru
      _
    %v64 = vld [vmem:[%s0] sm:$0xff]
    %v65 = vld [vmem:[%s0 + $0x8] sm:$0xff]
    %v66 = vld [vmem:[%s3] sm:$0x1]
    %v67 = vld [vmem:[%s4] sm:$0x1]
    %vm68 = vcmask 261120
    %v69 = vsel %vm68, %v64, 0.0
    %70 = vadd.xlane.f32.xlu0 %v69
    %v71 = vpop.xlane.xlu0 %70
    %v72 = vsel %vm68, %v65, 0.0
    %73 = vadd.xlane.f32.xlu0 %v72
    %v74 = vpop.xlane.xlu0 %73
    %v75 = vrcp.pop 32.0
    %v76 = vmul.f32 %v71, %v75
    %v77 = vmul.f32 %v74, %v75
    %v78 = vmul.f32 %v64, %v64
    %v79 = vmul.f32 %v65, %v65
    %v80 = vsel %vm68, %v78, 0.0
    %81 = vadd.xlane.f32.xlu0 %v80
    %v82 = vpop.xlane.xlu0 %81
    %v83 = vsel %vm68, %v79, 0.0
    %84 = vadd.xlane.f32.xlu0 %v83
    %v85 = vpop.xlane.xlu0 %84
    %v86 = vmul.f32 %v82, %v75
    %v87 = vmul.f32 %v85, %v75
    %v88 = vmul.f32 %v76, %v76
    %v89 = vmul.f32 %v77, %v77
    %v90 = vsub.f32 %v86, %v88
    %v91 = vsub.f32 %v87, %v89
    %v92 = vsub.f32 %v64, %v76
    %v93 = vsub.f32 %v65, %v77
    %v94 = vadd.f32 %v90, 1e-05
    %v95 = vadd.f32 %v91, 1e-05
    %v96 = vrsqrt.pop %v94
    %v97 = vrsqrt.pop %v95
    %v98 = vmul.f32 %v92, %v96
    %v99 = vmul.f32 %v93, %v97
    %v101 = vlaneseq
    %v102 = vshrl.u32 %v101, 7
    %v103 = vsub.s32 0, %v102
    %v104 = vrot.slane %v66, %v103
    %v106 = vmul.f32 %v98, %v104
    %v107 = vmul.f32 %v99, %v104
    %v109 = vlaneseq
    %v110 = vshrl.u32 %v109, 7
    %v111 = vsub.s32 0, %v110
    %v112 = vrot.slane %v67, %v111
    %v114 = vadd.f32 %v106, %v112
    %v115 = vadd.f32 %v107, %v112
    %v116 = vpack.c.bf16 %v115, %v114
    %v117 = vld [vmem:[%s5] sm:$0xf]
    %v118 = vld [vmem:[%s5 + $0x4] sm:$0xf]
    %v119 = vld [vmem:[%s5 + $0x8] sm:$0xf]
    %v120 = vld [vmem:[%s5 + $0xc] sm:$0xf]
    %v121 = vld [vmem:[%s6] sm:$0x1]
    %v123 = vlaneseq
    %v124 = vshrl.u32 %v123, 7
    %v125 = vsub.s32 0, %v124
    %v126 = vrot.slane %v121, %v125
    %v132 = vunpack.c.l.b16 %v117
    %v133 = vunpack.c.l.b16 %v118
    %v134 = vunpack.c.l.b16 %v119
    %v135 = vunpack.c.l.b16 %v120
    %v136 = vpack.c.b16 %v133, %v132
    %v137 = vpack.c.b16 %v135, %v134
    %v141 = vsel %vm68, %v116, 0
    %143 = vmatprep.subr.bf16.mxu0 0
    %144 = vmatpush1.bf16.msra.mxu0 0
    %145 = vmatprep.subr.bf16.mxu0 0
    %146 = vmatpush1.bf16.msra.mxu0 0
    %147 = vmatprep.subr.bf16.mxu0 0
    %148 = vmatpush1.bf16.msra.mxu0 0
    %149 = vmatprep.subr.bf16.mxu0 0
    %150 = vmatpush1.bf16.msra.mxu0 0
    %151 = vmatprep.subr.bf16.mxu0 0
    %152 = vmatpush1.bf16.msra.mxu0 0
    %153 = vmatprep.subr.bf16.mxu0 0
    %154 = vmatpush1.bf16.msra.mxu0 0
    %155 = vmatprep.subr.bf16.mxu0 0
    %156 = vmatpush1.bf16.msra.mxu0 %v137
    %157 = vmatprep.subr.bf16.mxu0 0
    %158 = vmatpush1.bf16.msra.mxu0 %v136
    %159 = vmatprep.subr.bf16.mxu0 0
    %160 = vmatpush2.bf16.msra.mxu0 0
    %161 = vmatprep.subr.bf16.mxu0 0
    %162 = vmatpush2.bf16.msra.mxu0 0
    %163 = vmatprep.subr.bf16.mxu0 0
    %164 = vmatpush2.bf16.msra.mxu0 0
    %165 = vmatprep.subr.bf16.mxu0 0
    %166 = vmatpush2.bf16.msra.mxu0 0
    %167 = vmatprep.subr.bf16.mxu0 0
    %168 = vmatpush2.bf16.msra.mxu0 0
    %169 = vmatprep.subr.bf16.mxu0 0
    %170 = vmatpush2.bf16.msra.mxu0 0
    %171 = vmatprep.subr.bf16.mxu0 0
    %172 = vmatpush2.bf16.msra.mxu0 0
    %173 = vmatprep.subr.bf16.mxu0 0
    %174 = vmatpush2.bf16.msra.mxu0 0
    %175 = vmatprep.mubr.bf16.mxu0 0
    %176 = vmatmul.mubr.bf16.gmra.mxu0 %v141
    %v177 = vpop.f32.mrf.mxu0
    %v178 = vadd.f32 %v126, %v177
    %v179 = vpop.f32.mrf.mxu0
    %v180 = vpop.f32.mrf.mxu0
    %v181 = vadd.f32 %v126, %v180
    %v182 = vpop.f32.mrf.mxu0
    %183 = vdwg.mxu0
    %v184 = vpack.c.bf16 %v181, %v178
    %v185 = vld [vmem:[%s1] sm:$0xff]
    %v186 = vld [vmem:[%s1 + $0x8] sm:$0xff]
    %v187 = vld [vmem:[#allocation2] sm:$0x1]
    %v188 = vlaneseq
    %v189 = vshrl.u32 %v188, 7
    %v190 = vsub.s32 0, %v189
    %v191 = vrot.slane %v187, %v190
    %v192 = vmul.f32 %v178, %v191
    %v193 = vmul.f32 %v181, %v191
    %v194 = vpack.c.bf16 %v193, %v192
    %196 = vrot.lane.b32.xlu0 %v184, 96
    %v197 = vpop.permute.xlu0 %196
    %v199 = vsel %vm68, %v194, 0
    %v202 = vsel %vm68, %v197, 0
    %204 = vmatprep.subr.bf16.mxu0 0
    %205 = vmatpush1.bf16.xpose.msra.mxu0 0
    %206 = vmatprep.subr.bf16.mxu0 0
    %207 = vmatpush1.bf16.xpose.msra.mxu0 0
    %208 = vmatprep.subr.bf16.mxu0 0
    %209 = vmatpush1.bf16.xpose.msra.mxu0 0
    %210 = vmatprep.subr.bf16.mxu0 0
    %211 = vmatpush1.bf16.xpose.msra.mxu0 0
    %212 = vmatprep.subr.bf16.mxu0 0
    %213 = vmatpush1.bf16.xpose.msra.mxu0 0
    %214 = vmatprep.subr.bf16.mxu0 0
    %215 = vmatpush1.bf16.xpose.msra.mxu0 0
    %216 = vmatprep.subr.bf16.mxu0 0
    %217 = vmatpush1.bf16.xpose.msra.mxu0 0
    %218 = vmatprep.subr.bf16.mxu0 0
    %219 = vmatpush1.bf16.xpose.msra.mxu0 %v202
    %220 = vmatprep.subr.bf16.mxu0 0
    %221 = vmatpush2.bf16.xpose.msra.mxu0 0
    %222 = vmatprep.subr.bf16.mxu0 0
    %223 = vmatpush2.bf16.xpose.msra.mxu0 0
    %224 = vmatprep.subr.bf16.mxu0 0
    %225 = vmatpush2.bf16.xpose.msra.mxu0 0
    %226 = vmatprep.subr.bf16.mxu0 0
    %227 = vmatpush2.bf16.xpose.msra.mxu0 0
    %228 = vmatprep.subr.bf16.mxu0 0
    %229 = vmatpush2.bf16.xpose.msra.mxu0 0
    %230 = vmatprep.subr.bf16.mxu0 0
    %231 = vmatpush2.bf16.xpose.msra.mxu0 0
    %232 = vmatprep.subr.bf16.mxu0 0
    %233 = vmatpush2.bf16.xpose.msra.mxu0 0
    %234 = vmatprep.subr.bf16.mxu0 0
    %235 = vmatpush2.bf16.xpose.msra.mxu0 0
    %236 = vmatprep.mubr.bf16.mxu0 0
    %237 = vmatmul.mubr.bf16.gmra.mxu0 %v199
    %v238 = vpop.f32.mrf.mxu0
    %v239 = vadd.f32 %v185, %v238
    %v240 = vpop.f32.mrf.mxu0
    %v241 = vpop.f32.mrf.mxu0
    %v242 = vadd.f32 %v186, %v241
    %v243 = vpop.f32.mrf.mxu0
    %244 = vdwg.mxu0
    %vm245 = vcmask 130048
    %v246 = vsel %vm245, %v239, -inf
    %247 = vmax.xlane.f32.xlu0 %v246
    %v248 = vpop.xlane.xlu0 %247
    %v249 = vsel %vm245, %v242, -inf
    %250 = vmax.xlane.f32.xlu0 %v249
    %v251 = vpop.xlane.xlu0 %250
    %v252 = vsub.f32 %v239, %v248
    %v253 = vsub.f32 %v242, %v251
    %v254 = vmul.f32 %v252, 1.442695
    %v255 = vpow.pop %v254
    %v256 = vmul.f32 %v253, 1.442695
    %v257 = vpow.pop %v256
    %v258 = vsel %vm245, %v255, 0.0
    %259 = vadd.xlane.f32.xlu0 %v258
    %v260 = vpop.xlane.xlu0 %259
    %v261 = vsel %vm245, %v257, 0.0
    %262 = vadd.xlane.f32.xlu0 %v261
    %v263 = vpop.xlane.xlu0 %262
    %v264 = vrcp.pop %v260
    %v265 = vrcp.pop %v263
    %v266 = vmul.f32 %v255, %v264
    %v267 = vmul.f32 %v257, %v265
    %v268 = vpack.c.bf16 %v267, %v266
    %270 = vrot.lane.b32.xlu0 %v191, 64
    %v271 = vpop.permute.xlu0 %270
    %v273 = vmul.f32 %v178, %v271
    %v274 = vmul.f32 %v181, %v271
    %v275 = vpack.c.bf16 %v274, %v273
    %v276 = vld [vmem:[#allocation2 + $0x1] sm:$0x1]
    %v277 = vlaneseq
    %v278 = vshrl.u32 %v277, 7
    %v279 = vsub.s32 0, %v278
    %v280 = vrot.slane %v276, %v279
    %v281 = vmul.f32 %v178, %v280
    %v282 = vmul.f32 %v181, %v280
    %v283 = vpack.c.bf16 %v282, %v281
    %v285 = vsel %vm68, %v283, 0
    %287 = vmatprep.subr.bf16.mxu0 0
    %288 = vmatpush1.bf16.xpose.msra.mxu0 0
    %289 = vmatprep.subr.bf16.mxu0 0
    %290 = vmatpush1.bf16.xpose.msra.mxu0 0
    %291 = vmatprep.subr.bf16.mxu0 0
    %292 = vmatpush1.bf16.xpose.msra.mxu0 0
    %293 = vmatprep.subr.bf16.mxu0 0
    %294 = vmatpush1.bf16.xpose.msra.mxu0 0
    %295 = vmatprep.subr.bf16.mxu0 0
    %296 = vmatpush1.bf16.xpose.msra.mxu0 0
    %297 = vmatprep.subr.bf16.mxu0 0
    %298 = vmatpush1.bf16.xpose.msra.mxu0 0
    %299 = vmatprep.subr.bf16.mxu0 0
    %300 = vmatpush1.bf16.xpose.msra.mxu0 0
    %301 = vmatprep.subr.bf16.mxu0 0
    %302 = vmatpush1.bf16.xpose.msra.mxu0 %v202
    %303 = vmatprep.subr.bf16.mxu0 0
    %304 = vmatpush2.bf16.xpose.msra.mxu0 0
    %305 = vmatprep.subr.bf16.mxu0 0
    %306 = vmatpush2.bf16.xpose.msra.mxu0 0
    %307 = vmatprep.subr.bf16.mxu0 0
    %308 = vmatpush2.bf16.xpose.msra.mxu0 0
    %309 = vmatprep.subr.bf16.mxu0 0
    %310 = vmatpush2.bf16.xpose.msra.mxu0 0
    %311 = vmatprep.subr.bf16.mxu0 0
    %312 = vmatpush2.bf16.xpose.msra.mxu0 0
    %313 = vmatprep.subr.bf16.mxu0 0
    %314 = vmatpush2.bf16.xpose.msra.mxu0 0
    %315 = vmatprep.subr.bf16.mxu0 0
    %316 = vmatpush2.bf16.xpose.msra.mxu0 0
    %317 = vmatprep.subr.bf16.mxu0 0
    %318 = vmatpush2.bf16.xpose.msra.mxu0 0
    %319 = vmatprep.mubr.bf16.mxu0 0
    %320 = vmatmul.mubr.bf16.gmra.mxu0 %v285
    %v321 = vpop.f32.mrf.mxu0
    %v322 = vadd.f32 %v185, %v321
    %v323 = vpop.f32.mrf.mxu0
    %v324 = vpop.f32.mrf.mxu0
    %v325 = vadd.f32 %v186, %v324
    %v326 = vpop.f32.mrf.mxu0
    %327 = vdwg.mxu0
    %v328 = vsel %vm245, %v322, -inf
    %329 = vmax.xlane.f32.xlu0 %v328
    %v330 = vpop.xlane.xlu0 %329
    %v331 = vsel %vm245, %v325, -inf
    %332 = vmax.xlane.f32.xlu0 %v331
    %v333 = vpop.xlane.xlu0 %332
    %v334 = vsub.f32 %v322, %v330
    %v335 = vsub.f32 %v325, %v333
    %v336 = vmul.f32 %v334, 1.442695
    %v337 = vpow.pop %v336
    %v338 = vmul.f32 %v335, 1.442695
    %v339 = vpow.pop %v338
    %v340 = vsel %vm245, %v337, 0.0
    %341 = vadd.xlane.f32.xlu0 %v340
    %v342 = vpop.xlane.xlu0 %341
    %v343 = vsel %vm245, %v339, 0.0
    %344 = vadd.xlane.f32.xlu0 %v343
    %v345 = vpop.xlane.xlu0 %344
    %v346 = vrcp.pop %v342
    %v347 = vrcp.pop %v345
    %v348 = vmul.f32 %v337, %v346
    %v349 = vmul.f32 %v339, %v347
    %v350 = vpack.c.bf16 %v349, %v348
    %352 = vrot.lane.b32.xlu0 %v280, 64
    %v353 = vpop.permute.xlu0 %352
    %v355 = vmul.f32 %v178, %v353
    %v356 = vmul.f32 %v181, %v353
    %v357 = vpack.c.bf16 %v356, %v355
    %359 = vrot.lane.b32.xlu0 %v357, 64
    %v360 = vpop.permute.xlu0 %359
    %v363 = vsel %vm245, %v350, 0
    %365 = vmatprep.subr.bf16.mxu0 0
    %366 = vmatpush1.bf16.msra.mxu0 0
    %367 = vmatprep.subr.bf16.mxu0 0
    %368 = vmatpush1.bf16.msra.mxu0 0
    %369 = vmatprep.subr.bf16.mxu0 0
    %370 = vmatpush1.bf16.msra.mxu0 0
    %371 = vmatprep.subr.bf16.mxu0 0
    %372 = vmatpush1.bf16.msra.mxu0 0
    %373 = vmatprep.subr.bf16.mxu0 0
    %374 = vmatpush1.bf16.msra.mxu0 0
    %375 = vmatprep.subr.bf16.mxu0 0
    %376 = vmatpush1.bf16.msra.mxu0 0
    %377 = vmatprep.subr.bf16.mxu0 0
    %378 = vmatpush1.bf16.msra.mxu0 0
    %379 = vmatprep.subr.bf16.mxu0 0
    %380 = vmatpush1.bf16.msra.mxu0 %v360
    %381 = vmatprep.subr.bf16.mxu0 0
    %382 = vmatpush2.bf16.msra.mxu0 0
    %383 = vmatprep.subr.bf16.mxu0 0
    %384 = vmatpush2.bf16.msra.mxu0 0
    %385 = vmatprep.subr.bf16.mxu0 0
    %386 = vmatpush2.bf16.msra.mxu0 0
    %387 = vmatprep.subr.bf16.mxu0 0
    %388 = vmatpush2.bf16.msra.mxu0 0
    %389 = vmatprep.subr.bf16.mxu0 0
    %390 = vmatpush2.bf16.msra.mxu0 0
    %391 = vmatprep.subr.bf16.mxu0 0
    %392 = vmatpush2.bf16.msra.mxu0 0
    %393 = vmatprep.subr.bf16.mxu0 0
    %394 = vmatpush2.bf16.msra.mxu0 0
    %395 = vmatprep.subr.bf16.mxu0 0
    %396 = vmatpush2.bf16.msra.mxu0 0
    %397 = vmatprep.mubr.bf16.mxu0 0
    %398 = vmatmul.mubr.bf16.gmra.mxu0 %v363
    %v399 = vpop.f32.mrf.mxu0
    %v400 = vadd.f32 0.0, %v399
    %v401 = vpop.f32.mrf.mxu0
    %v402 = vpop.f32.mrf.mxu0
    %v403 = vadd.f32 0.0, %v402
    %v404 = vpop.f32.mrf.mxu0
    %405 = vdwg.mxu0
    %407 = vrot.lane.b32.xlu0 %v275, 64
    %v408 = vpop.permute.xlu0 %407
    %v411 = vsel %vm245, %v268, 0
    %413 = vmatprep.subr.bf16.mxu0 0
    %414 = vmatpush1.bf16.msra.mxu0 0
    %415 = vmatprep.subr.bf16.mxu0 0
    %416 = vmatpush1.bf16.msra.mxu0 0
    %417 = vmatprep.subr.bf16.mxu0 0
    %418 = vmatpush1.bf16.msra.mxu0 0
    %419 = vmatprep.subr.bf16.mxu0 0
    %420 = vmatpush1.bf16.msra.mxu0 0
    %421 = vmatprep.subr.bf16.mxu0 0
    %422 = vmatpush1.bf16.msra.mxu0 0
    %423 = vmatprep.subr.bf16.mxu0 0
    %424 = vmatpush1.bf16.msra.mxu0 0
    %425 = vmatprep.subr.bf16.mxu0 0
    %426 = vmatpush1.bf16.msra.mxu0 0
    %427 = vmatprep.subr.bf16.mxu0 0
    %428 = vmatpush1.bf16.msra.mxu0 %v408
    %429 = vmatprep.subr.bf16.mxu0 0
    %430 = vmatpush2.bf16.msra.mxu0 0
    %431 = vmatprep.subr.bf16.mxu0 0
    %432 = vmatpush2.bf16.msra.mxu0 0
    %433 = vmatprep.subr.bf16.mxu0 0
    %434 = vmatpush2.bf16.msra.mxu0 0
    %435 = vmatprep.subr.bf16.mxu0 0
    %436 = vmatpush2.bf16.msra.mxu0 0
    %437 = vmatprep.subr.bf16.mxu0 0
    %438 = vmatpush2.bf16.msra.mxu0 0
    %439 = vmatprep.subr.bf16.mxu0 0
    %440 = vmatpush2.bf16.msra.mxu0 0
    %441 = vmatprep.subr.bf16.mxu0 0
    %442 = vmatpush2.bf16.msra.mxu0 0
    %443 = vmatprep.subr.bf16.mxu0 0
    %444 = vmatpush2.bf16.msra.mxu0 0
    %445 = vmatprep.mubr.bf16.mxu0 0
    %446 = vmatmul.mubr.bf16.gmra.mxu0 %v411
    %v447 = vpop.f32.mrf.mxu0
    %v448 = vadd.f32 %v400, %v447
    %v449 = vpop.f32.mrf.mxu0
    %v450 = vpop.f32.mrf.mxu0
    %v451 = vadd.f32 %v403, %v450
    %v452 = vpop.f32.mrf.mxu0
    %453 = vdwg.mxu0
    %v454 = vld [vmem:[#allocation2 + $0x2] sm:$0x1]
    %v455 = vlaneseq
    %v456 = vshrl.u32 %v455, 7
    %v457 = vsub.s32 0, %v456
    %v458 = vrot.slane %v454, %v457
    %v459 = vmul.f32 %v178, %v458
    %v460 = vmul.f32 %v181, %v458
    %v461 = vpack.c.bf16 %v460, %v459
    %v463 = vsel %vm68, %v461, 0
    %465 = vmatprep.subr.bf16.mxu0 0
    %466 = vmatpush1.bf16.xpose.msra.mxu0 0
    %467 = vmatprep.subr.bf16.mxu0 0
    %468 = vmatpush1.bf16.xpose.msra.mxu0 0
    %469 = vmatprep.subr.bf16.mxu0 0
    %470 = vmatpush1.bf16.xpose.msra.mxu0 0
    %471 = vmatprep.subr.bf16.mxu0 0
    %472 = vmatpush1.bf16.xpose.msra.mxu0 0
    %473 = vmatprep.subr.bf16.mxu0 0
    %474 = vmatpush1.bf16.xpose.msra.mxu0 0
    %475 = vmatprep.subr.bf16.mxu0 0
    %476 = vmatpush1.bf16.xpose.msra.mxu0 0
    %477 = vmatprep.subr.bf16.mxu0 0
    %478 = vmatpush1.bf16.xpose.msra.mxu0 0
    %479 = vmatprep.subr.bf16.mxu0 0
    %480 = vmatpush1.bf16.xpose.msra.mxu0 %v202
    %481 = vmatprep.subr.bf16.mxu0 0
    %482 = vmatpush2.bf16.xpose.msra.mxu0 0
    %483 = vmatprep.subr.bf16.mxu0 0
    %484 = vmatpush2.bf16.xpose.msra.mxu0 0
    %485 = vmatprep.subr.bf16.mxu0 0
    %486 = vmatpush2.bf16.xpose.msra.mxu0 0
    %487 = vmatprep.subr.bf16.mxu0 0
    %488 = vmatpush2.bf16.xpose.msra.mxu0 0
    %489 = vmatprep.subr.bf16.mxu0 0
    %490 = vmatpush2.bf16.xpose.msra.mxu0 0
    %491 = vmatprep.subr.bf16.mxu0 0
    %492 = vmatpush2.bf16.xpose.msra.mxu0 0
    %493 = vmatprep.subr.bf16.mxu0 0
    %494 = vmatpush2.bf16.xpose.msra.mxu0 0
    %495 = vmatprep.subr.bf16.mxu0 0
    %496 = vmatpush2.bf16.xpose.msra.mxu0 0
    %497 = vmatprep.mubr.bf16.mxu0 0
    %498 = vmatmul.mubr.bf16.gmra.mxu0 %v463
    %v499 = vpop.f32.mrf.mxu0
    %v500 = vadd.f32 %v185, %v499
    %v501 = vpop.f32.mrf.mxu0
    %v502 = vpop.f32.mrf.mxu0
    %v503 = vadd.f32 %v186, %v502
    %v504 = vpop.f32.mrf.mxu0
    %505 = vdwg.mxu0
    %v506 = vsel %vm245, %v500, -inf
    %507 = vmax.xlane.f32.xlu0 %v506
    %v508 = vpop.xlane.xlu0 %507
    %v509 = vsel %vm245, %v503, -inf
    %510 = vmax.xlane.f32.xlu0 %v509
    %v511 = vpop.xlane.xlu0 %510
    %v512 = vsub.f32 %v500, %v508
    %v513 = vsub.f32 %v503, %v511
    %v514 = vmul.f32 %v512, 1.442695
    %v515 = vpow.pop %v514
    %v516 = vmul.f32 %v513, 1.442695
    %v517 = vpow.pop %v516
    %v518 = vsel %vm245, %v515, 0.0
    %519 = vadd.xlane.f32.xlu0 %v518
    %v520 = vpop.xlane.xlu0 %519
    %v521 = vsel %vm245, %v517, 0.0
    %522 = vadd.xlane.f32.xlu0 %v521
    %v523 = vpop.xlane.xlu0 %522
    %v524 = vrcp.pop %v520
    %v525 = vrcp.pop %v523
    %v526 = vmul.f32 %v515, %v524
    %v527 = vmul.f32 %v517, %v525
    %v528 = vpack.c.bf16 %v527, %v526
    %530 = vrot.lane.b32.xlu0 %v458, 64
    %v531 = vpop.permute.xlu0 %530
    %v533 = vmul.f32 %v178, %v531
    %v534 = vmul.f32 %v181, %v531
    %v535 = vpack.c.bf16 %v534, %v533
    %537 = vrot.lane.b32.xlu0 %v535, 64
    %v538 = vpop.permute.xlu0 %537
    %v541 = vsel %vm245, %v528, 0
    %543 = vmatprep.subr.bf16.mxu0 0
    %544 = vmatpush1.bf16.msra.mxu0 0
    %545 = vmatprep.subr.bf16.mxu0 0
    %546 = vmatpush1.bf16.msra.mxu0 0
    %547 = vmatprep.subr.bf16.mxu0 0
    %548 = vmatpush1.bf16.msra.mxu0 0
    %549 = vmatprep.subr.bf16.mxu0 0
    %550 = vmatpush1.bf16.msra.mxu0 0
    %551 = vmatprep.subr.bf16.mxu0 0
    %552 = vmatpush1.bf16.msra.mxu0 0
    %553 = vmatprep.subr.bf16.mxu0 0
    %554 = vmatpush1.bf16.msra.mxu0 0
    %555 = vmatprep.subr.bf16.mxu0 0
    %556 = vmatpush1.bf16.msra.mxu0 0
    %557 = vmatprep.subr.bf16.mxu0 0
    %558 = vmatpush1.bf16.msra.mxu0 %v538
    %559 = vmatprep.subr.bf16.mxu0 0
    %560 = vmatpush2.bf16.msra.mxu0 0
    %561 = vmatprep.subr.bf16.mxu0 0
    %562 = vmatpush2.bf16.msra.mxu0 0
    %563 = vmatprep.subr.bf16.mxu0 0
    %564 = vmatpush2.bf16.msra.mxu0 0
    %565 = vmatprep.subr.bf16.mxu0 0
    %566 = vmatpush2.bf16.msra.mxu0 0
    %567 = vmatprep.subr.bf16.mxu0 0
    %568 = vmatpush2.bf16.msra.mxu0 0
    %569 = vmatprep.subr.bf16.mxu0 0
    %570 = vmatpush2.bf16.msra.mxu0 0
    %571 = vmatprep.subr.bf16.mxu0 0
    %572 = vmatpush2.bf16.msra.mxu0 0
    %573 = vmatprep.subr.bf16.mxu0 0
    %574 = vmatpush2.bf16.msra.mxu0 0
    %575 = vmatprep.mubr.bf16.mxu0 0
    %576 = vmatmul.mubr.bf16.gmra.mxu0 %v541
    %v577 = vpop.f32.mrf.mxu0
    %v578 = vadd.f32 0.0, %v577
    %v579 = vpop.f32.mrf.mxu0
    %v580 = vpop.f32.mrf.mxu0
    %v581 = vadd.f32 0.0, %v580
    %v582 = vpop.f32.mrf.mxu0
    %583 = vdwg.mxu0
    %v584 = vadd.f32 %v448, %v578
    %v585 = vadd.f32 %v451, %v581
    %v586 = vld [vmem:[#allocation2 + $0x3] sm:$0x1]
    %v587 = vlaneseq
    %v588 = vshrl.u32 %v587, 7
    %v589 = vsub.s32 0, %v588
    %v590 = vrot.slane %v586, %v589
    %v591 = vmul.f32 %v178, %v590
    %v592 = vmul.f32 %v181, %v590
    %v593 = vpack.c.bf16 %v592, %v591
    %v595 = vsel %vm68, %v593, 0
    %597 = vmatprep.subr.bf16.mxu0 0
    %598 = vmatpush1.bf16.xpose.msra.mxu0 0
    %599 = vmatprep.subr.bf16.mxu0 0
    %600 = vmatpush1.bf16.xpose.msra.mxu0 0
    %601 = vmatprep.subr.bf16.mxu0 0
    %602 = vmatpush1.bf16.xpose.msra.mxu0 0
    %603 = vmatprep.subr.bf16.mxu0 0
    %604 = vmatpush1.bf16.xpose.msra.mxu0 0
    %605 = vmatprep.subr.bf16.mxu0 0
    %606 = vmatpush1.bf16.xpose.msra.mxu0 0
    %607 = vmatprep.subr.bf16.mxu0 0
    %608 = vmatpush1.bf16.xpose.msra.mxu0 0
    %609 = vmatprep.subr.bf16.mxu0 0
    %610 = vmatpush1.bf16.xpose.msra.mxu0 0
    %611 = vmatprep.subr.bf16.mxu0 0
    %612 = vmatpush1.bf16.xpose.msra.mxu0 %v202
    %613 = vmatprep.subr.bf16.mxu0 0
    %614 = vmatpush2.bf16.xpose.msra.mxu0 0
    %615 = vmatprep.subr.bf16.mxu0 0
    %616 = vmatpush2.bf16.xpose.msra.mxu0 0
    %617 = vmatprep.subr.bf16.mxu0 0
    %618 = vmatpush2.bf16.xpose.msra.mxu0 0
    %619 = vmatprep.subr.bf16.mxu0 0
    %620 = vmatpush2.bf16.xpose.msra.mxu0 0
    %621 = vmatprep.subr.bf16.mxu0 0
    %622 = vmatpush2.bf16.xpose.msra.mxu0 0
    %623 = vmatprep.subr.bf16.mxu0 0
    %624 = vmatpush2.bf16.xpose.msra.mxu0 0
    %625 = vmatprep.subr.bf16.mxu0 0
    %626 = vmatpush2.bf16.xpose.msra.mxu0 0
    %627 = vmatprep.subr.bf16.mxu0 0
    %628 = vmatpush2.bf16.xpose.msra.mxu0 0
    %629 = vmatprep.mubr.bf16.mxu0 0
    %630 = vmatmul.mubr.bf16.gmra.mxu0 %v595
    %v631 = vpop.f32.mrf.mxu0
    %v632 = vadd.f32 %v185, %v631
    %v633 = vpop.f32.mrf.mxu0
    %v634 = vpop.f32.mrf.mxu0
    %v635 = vadd.f32 %v186, %v634
    %v636 = vpop.f32.mrf.mxu0
    %637 = vdwg.mxu0
    %v638 = vsel %vm245, %v632, -inf
    %639 = vmax.xlane.f32.xlu0 %v638
    %v640 = vpop.xlane.xlu0 %639
    %v641 = vsel %vm245, %v635, -inf
    %642 = vmax.xlane.f32.xlu0 %v641
    %v643 = vpop.xlane.xlu0 %642
    %v644 = vsub.f32 %v632, %v640
    %v645 = vsub.f32 %v635, %v643
    %v646 = vmul.f32 %v644, 1.442695
    %v647 = vpow.pop %v646
    %v648 = vmul.f32 %v645, 1.442695
    %v649 = vpow.pop %v648
    %v650 = vsel %vm245, %v647, 0.0
    %651 = vadd.xlane.f32.xlu0 %v650
    %v652 = vpop.xlane.xlu0 %651
    %v653 = vsel %vm245, %v649, 0.0
    %654 = vadd.xlane.f32.xlu0 %v653
    %v655 = vpop.xlane.xlu0 %654
    %v656 = vrcp.pop %v652
    %v657 = vrcp.pop %v655
    %v658 = vmul.f32 %v647, %v656
    %v659 = vmul.f32 %v649, %v657
    %v660 = vpack.c.bf16 %v659, %v658
    %662 = vrot.lane.b32.xlu0 %v590, 64
    %v663 = vpop.permute.xlu0 %662
    %v665 = vmul.f32 %v178, %v663
    %v666 = vmul.f32 %v181, %v663
    %v667 = vpack.c.bf16 %v666, %v665
    %669 = vrot.lane.b32.xlu0 %v667, 64
    %v670 = vpop.permute.xlu0 %669
    %v673 = vsel %vm245, %v660, 0
    %675 = vmatprep.subr.bf16.mxu0 0
    %676 = vmatpush1.bf16.msra.mxu0 0
    %677 = vmatprep.subr.bf16.mxu0 0
    %678 = vmatpush1.bf16.msra.mxu0 0
    %679 = vmatprep.subr.bf16.mxu0 0
    %680 = vmatpush1.bf16.msra.mxu0 0
    %681 = vmatprep.subr.bf16.mxu0 0
    %682 = vmatpush1.bf16.msra.mxu0 0
    %683 = vmatprep.subr.bf16.mxu0 0
    %684 = vmatpush1.bf16.msra.mxu0 0
    %685 = vmatprep.subr.bf16.mxu0 0
    %686 = vmatpush1.bf16.msra.mxu0 0
    %687 = vmatprep.subr.bf16.mxu0 0
    %688 = vmatpush1.bf16.msra.mxu0 0
    %689 = vmatprep.subr.bf16.mxu0 0
    %690 = vmatpush1.bf16.msra.mxu0 %v670
    %691 = vmatprep.subr.bf16.mxu0 0
    %692 = vmatpush2.bf16.msra.mxu0 0
    %693 = vmatprep.subr.bf16.mxu0 0
    %694 = vmatpush2.bf16.msra.mxu0 0
    %695 = vmatprep.subr.bf16.mxu0 0
    %696 = vmatpush2.bf16.msra.mxu0 0
    %697 = vmatprep.subr.bf16.mxu0 0
    %698 = vmatpush2.bf16.msra.mxu0 0
    %699 = vmatprep.subr.bf16.mxu0 0
    %700 = vmatpush2.bf16.msra.mxu0 0
    %701 = vmatprep.subr.bf16.mxu0 0
    %702 = vmatpush2.bf16.msra.mxu0 0
    %703 = vmatprep.subr.bf16.mxu0 0
    %704 = vmatpush2.bf16.msra.mxu0 0
    %705 = vmatprep.subr.bf16.mxu0 0
    %706 = vmatpush2.bf16.msra.mxu0 0
    %707 = vmatprep.mubr.bf16.mxu0 0
    %708 = vmatmul.mubr.bf16.gmra.mxu0 %v673
    %v709 = vpop.f32.mrf.mxu0
    %v710 = vadd.f32 0.0, %v709
    %v711 = vpop.f32.mrf.mxu0
    %v712 = vpop.f32.mrf.mxu0
    %v713 = vadd.f32 0.0, %v712
    %v714 = vpop.f32.mrf.mxu0
    %715 = vdwg.mxu0
    %v716 = vadd.f32 %v584, %v710
    %v717 = vadd.f32 %v585, %v713
    %v718 = vpack.c.bf16 %v717, %v716
    %v719 = vld [vmem:[%s7] sm:$0xf]
    %v720 = vld [vmem:[%s7 + $0x4] sm:$0xf]
    %v721 = vld [vmem:[%s7 + $0x8] sm:$0xf]
    %v722 = vld [vmem:[%s7 + $0xc] sm:$0xf]
    %v723 = vld [vmem:[%s8] sm:$0x1]
    %v725 = vlaneseq
    %v726 = vshrl.u32 %v725, 7
    %v727 = vsub.s32 0, %v726
    %v728 = vrot.slane %v723, %v727
    %v734 = vunpack.c.l.b16 %v719
    %v735 = vunpack.c.l.b16 %v720
    %v736 = vunpack.c.l.b16 %v721
    %v737 = vunpack.c.l.b16 %v722
    %v738 = vpack.c.b16 %v735, %v734
    %v739 = vpack.c.b16 %v737, %v736
    %v743 = vsel %vm68, %v718, 0
    %745 = vmatprep.subr.bf16.mxu0 0
    %746 = vmatpush1.bf16.msra.mxu0 0
    %747 = vmatprep.subr.bf16.mxu0 0
    %748 = vmatpush1.bf16.msra.mxu0 0
    %749 = vmatprep.subr.bf16.mxu0 0
    %750 = vmatpush1.bf16.msra.mxu0 0
    %751 = vmatprep.subr.bf16.mxu0 0
    %752 = vmatpush1.bf16.msra.mxu0 0
    %753 = vmatprep.subr.bf16.mxu0 0
    %754 = vmatpush1.bf16.msra.mxu0 0
    %755 = vmatprep.subr.bf16.mxu0 0
    %756 = vmatpush1.bf16.msra.mxu0 0
    %757 = vmatprep.subr.bf16.mxu0 0
    %758 = vmatpush1.bf16.msra.mxu0 %v739
    %759 = vmatprep.subr.bf16.mxu0 0
    %760 = vmatpush1.bf16.msra.mxu0 %v738
    %761 = vmatprep.subr.bf16.mxu0 0
    %762 = vmatpush2.bf16.msra.mxu0 0
    %763 = vmatprep.subr.bf16.mxu0 0
    %764 = vmatpush2.bf16.msra.mxu0 0
    %765 = vmatprep.subr.bf16.mxu0 0
    %766 = vmatpush2.bf16.msra.mxu0 0
    %767 = vmatprep.subr.bf16.mxu0 0
    %768 = vmatpush2.bf16.msra.mxu0 0
    %769 = vmatprep.subr.bf16.mxu0 0
    %770 = vmatpush2.bf16.msra.mxu0 0
    %771 = vmatprep.subr.bf16.mxu0 0
    %772 = vmatpush2.bf16.msra.mxu0 0
    %773 = vmatprep.subr.bf16.mxu0 0
    %774 = vmatpush2.bf16.msra.mxu0 0
    %775 = vmatprep.subr.bf16.mxu0 0
    %776 = vmatpush2.bf16.msra.mxu0 0
    %777 = vmatprep.mubr.bf16.mxu0 0
    %778 = vmatmul.mubr.bf16.gmra.mxu0 %v743
    %v779 = vpop.f32.mrf.mxu0
    %v780 = vadd.f32 %v728, %v779
    %v781 = vpop.f32.mrf.mxu0
    %v782 = vpop.f32.mrf.mxu0
    %v783 = vadd.f32 %v728, %v782
    %v784 = vpop.f32.mrf.mxu0
    %785 = vdwg.mxu0
    %v786 = vadd.f32 %v64, %v780
    %v787 = vadd.f32 %v65, %v783
    %v788 = vld [vmem:[%s9] sm:$0x1]
    %v789 = vld [vmem:[%s10] sm:$0x1]
    %v790 = vsel %vm68, %v786, 0.0
    %791 = vadd.xlane.f32.xlu0 %v790
    %v792 = vpop.xlane.xlu0 %791
    %v793 = vsel %vm68, %v787, 0.0
    %794 = vadd.xlane.f32.xlu0 %v793
    %v795 = vpop.xlane.xlu0 %794
    %v796 = vmul.f32 %v792, %v75
    %v797 = vmul.f32 %v795, %v75
    %v798 = vmul.f32 %v786, %v786
    %v799 = vmul.f32 %v787, %v787
    %v800 = vsel %vm68, %v798, 0.0
    %801 = vadd.xlane.f32.xlu0 %v800
    %v802 = vpop.xlane.xlu0 %801
    %v803 = vsel %vm68, %v799, 0.0
    %804 = vadd.xlane.f32.xlu0 %v803
    %v805 = vpop.xlane.xlu0 %804
    %v806 = vmul.f32 %v802, %v75
    %v807 = vmul.f32 %v805, %v75
    %v808 = vmul.f32 %v796, %v796
    %v809 = vmul.f32 %v797, %v797
    %v810 = vsub.f32 %v806, %v808
    %v811 = vsub.f32 %v807, %v809
    %v812 = vsub.f32 %v786, %v796
    %v813 = vsub.f32 %v787, %v797
    %v814 = vadd.f32 %v810, 1e-05
    %v815 = vadd.f32 %v811, 1e-05
    %v816 = vrsqrt.pop %v814
    %v817 = vrsqrt.pop %v815
    %v818 = vmul.f32 %v812, %v816
    %v819 = vmul.f32 %v813, %v817
    %v821 = vlaneseq
    %v822 = vshrl.u32 %v821, 7
    %v823 = vsub.s32 0, %v822
    %v824 = vrot.slane %v788, %v823
    %v826 = vmul.f32 %v818, %v824
    %v827 = vmul.f32 %v819, %v824
    %v829 = vlaneseq
    %v830 = vshrl.u32 %v829, 7
    %v831 = vsub.s32 0, %v830
    %v832 = vrot.slane %v789, %v831
    %v834 = vadd.f32 %v826, %v832
    %v835 = vadd.f32 %v827, %v832
    %v836 = vpack.c.bf16 %v835, %v834
    %v837 = vld [vmem:[%s11] sm:$0xf]
    %v838 = vld [vmem:[%s11 + $0x4] sm:$0xf]
    %v839 = vld [vmem:[%s11 + $0x8] sm:$0xf]
    %v840 = vld [vmem:[%s11 + $0xc] sm:$0xf]
    %v841 = vld [vmem:[%s12] sm:$0x1]
    %v843 = vlaneseq
    %v844 = vshrl.u32 %v843, 7
    %v845 = vsub.s32 0, %v844
    %v846 = vrot.slane %v841, %v845
    %v852 = vunpack.c.l.b16 %v837
    %v853 = vunpack.c.l.b16 %v838
    %v854 = vunpack.c.l.b16 %v839
    %v855 = vunpack.c.l.b16 %v840
    %v856 = vpack.c.b16 %v853, %v852
    %v857 = vpack.c.b16 %v855, %v854
    %v861 = vsel %vm68, %v836, 0
    %863 = vmatprep.subr.bf16.mxu0 0
    %864 = vmatpush1.bf16.msra.mxu0 0
    %865 = vmatprep.subr.bf16.mxu0 0
    %866 = vmatpush1.bf16.msra.mxu0 0
    %867 = vmatprep.subr.bf16.mxu0 0
    %868 = vmatpush1.bf16.msra.mxu0 0
    %869 = vmatprep.subr.bf16.mxu0 0
    %870 = vmatpush1.bf16.msra.mxu0 0
    %871 = vmatprep.subr.bf16.mxu0 0
    %872 = vmatpush1.bf16.msra.mxu0 0
    %873 = vmatprep.subr.bf16.mxu0 0
    %874 = vmatpush1.bf16.msra.mxu0 0
    %875 = vmatprep.subr.bf16.mxu0 0
    %876 = vmatpush1.bf16.msra.mxu0 %v857
    %877 = vmatprep.subr.bf16.mxu0 0
    %878 = vmatpush1.bf16.msra.mxu0 %v856
    %879 = vmatprep.subr.bf16.mxu0 0
    %880 = vmatpush2.bf16.msra.mxu0 0
    %881 = vmatprep.subr.bf16.mxu0 0
    %882 = vmatpush2.bf16.msra.mxu0 0
    %883 = vmatprep.subr.bf16.mxu0 0
    %884 = vmatpush2.bf16.msra.mxu0 0
    %885 = vmatprep.subr.bf16.mxu0 0
    %886 = vmatpush2.bf16.msra.mxu0 0
    %887 = vmatprep.subr.bf16.mxu0 0
    %888 = vmatpush2.bf16.msra.mxu0 0
    %889 = vmatprep.subr.bf16.mxu0 0
    %890 = vmatpush2.bf16.msra.mxu0 0
    %891 = vmatprep.subr.bf16.mxu0 0
    %892 = vmatpush2.bf16.msra.mxu0 0
    %893 = vmatprep.subr.bf16.mxu0 0
    %894 = vmatpush2.bf16.msra.mxu0 0
    %895 = vmatprep.mubr.bf16.mxu0 0
    %896 = vmatmul.mubr.bf16.gmra.mxu0 %v861
    %v897 = vpop.f32.mrf.mxu0
    %v898 = vadd.f32 %v846, %v897
    %v899 = vpop.f32.mrf.mxu0
    %v900 = vpop.f32.mrf.mxu0
    %v901 = vadd.f32 %v846, %v900
    %v902 = vpop.f32.mrf.mxu0
    %903 = vdwg.mxu0
    %v904 = vmul.f32 %v898, 0.5
    %v905 = vmul.f32 %v901, 0.5
    %v906 = vmul.f32 %v898, 0.044715
    %v907 = vmul.f32 %v901, 0.044715
    %v908 = vmul.f32 %v906, %v898
    %v909 = vmul.f32 %v907, %v901
    %v910 = vmul.f32 %v908, %v898
    %v911 = vmul.f32 %v909, %v901
    %v912 = vadd.f32 %v898, %v910
    %v913 = vadd.f32 %v901, %v911
    %v914 = vmul.f32 %v912, 0.7978846
    %v915 = vmul.f32 %v913, 0.7978846
    %v916 = vtanh.pop %v914
    %v917 = vtanh.pop %v915
    %v918 = vadd.f32 %v916, 1.0
    %v919 = vadd.f32 %v917, 1.0
    %v920 = vmul.f32 %v904, %v918
    %v921 = vmul.f32 %v905, %v919
    %v922 = vpack.c.bf16 %v921, %v920
    %v923 = vld [vmem:[%s13] sm:$0xf]
    %v924 = vld [vmem:[%s13 + $0x4] sm:$0xf]
    %v925 = vld [vmem:[%s13 + $0x8] sm:$0xf]
    %v926 = vld [vmem:[%s13 + $0xc] sm:$0xf]
    %v927 = vld [vmem:[%s13 + $0x10] sm:$0xf]
    %v928 = vld [vmem:[%s13 + $0x14] sm:$0xf]
    %v929 = vld [vmem:[%s13 + $0x18] sm:$0xf]
    %v930 = vld [vmem:[%s13 + $0x1c] sm:$0xf]
    %v931 = vld [vmem:[%s13 + $0x20] sm:$0xf]
    %v932 = vld [vmem:[%s13 + $0x24] sm:$0xf]
    %v933 = vld [vmem:[%s13 + $0x28] sm:$0xf]
    %v934 = vld [vmem:[%s13 + $0x2c] sm:$0xf]
    %v935 = vld [vmem:[%s13 + $0x30] sm:$0xf]
    %v936 = vld [vmem:[%s13 + $0x34] sm:$0xf]
    %v937 = vld [vmem:[%s13 + $0x38] sm:$0xf]
    %v938 = vld [vmem:[%s13 + $0x3c] sm:$0xf]
    %v939 = vld [vmem:[%s14] sm:$0x1]
    %v941 = vlaneseq
    %v942 = vshrl.u32 %v941, 7
    %v943 = vsub.s32 0, %v942
    %v944 = vrot.slane %v939, %v943
    %v962 = vunpack.c.l.b16 %v923
    %v963 = vunpack.c.l.b16 %v924
    %v964 = vunpack.c.l.b16 %v925
    %v965 = vunpack.c.l.b16 %v926
    %v966 = vunpack.c.l.b16 %v927
    %v967 = vunpack.c.l.b16 %v928
    %v968 = vunpack.c.l.b16 %v929
    %v969 = vunpack.c.l.b16 %v930
    %v970 = vunpack.c.l.b16 %v931
    %v971 = vunpack.c.l.b16 %v932
    %v972 = vunpack.c.l.b16 %v933
    %v973 = vunpack.c.l.b16 %v934
    %v974 = vunpack.c.l.b16 %v935
    %v975 = vunpack.c.l.b16 %v936
    %v976 = vunpack.c.l.b16 %v937
    %v977 = vunpack.c.l.b16 %v938
    %v978 = vpack.c.b16 %v963, %v962
    %v979 = vpack.c.b16 %v965, %v964
    %v980 = vpack.c.b16 %v967, %v966
    %v981 = vpack.c.b16 %v969, %v968
    %v982 = vpack.c.b16 %v971, %v970
    %v983 = vpack.c.b16 %v973, %v972
    %v984 = vpack.c.b16 %v975, %v974
    %v985 = vpack.c.b16 %v977, %v976
    %994 = vmatprep.subr.bf16.mxu0 0
    %995 = vmatpush1.bf16.msra.mxu0 %v985
    %996 = vmatprep.subr.bf16.mxu0 0
    %997 = vmatpush1.bf16.msra.mxu0 %v984
    %998 = vmatprep.subr.bf16.mxu0 0
    %999 = vmatpush1.bf16.msra.mxu0 %v983
    %1000 = vmatprep.subr.bf16.mxu0 0
    %1001 = vmatpush1.bf16.msra.mxu0 %v982
    %1002 = vmatprep.subr.bf16.mxu0 0
    %1003 = vmatpush1.bf16.msra.mxu0 %v981
    %1004 = vmatprep.subr.bf16.mxu0 0
    %1005 = vmatpush1.bf16.msra.mxu0 %v980
    %1006 = vmatprep.subr.bf16.mxu0 0
    %1007 = vmatpush1.bf16.msra.mxu0 %v979
    %1008 = vmatprep.subr.bf16.mxu0 0
    %1009 = vmatpush1.bf16.msra.mxu0 %v978
    %1010 = vmatprep.subr.bf16.mxu0 0
    %1011 = vmatpush2.bf16.msra.mxu0 0
    %1012 = vmatprep.subr.bf16.mxu0 0
    %1013 = vmatpush2.bf16.msra.mxu0 0
    %1014 = vmatprep.subr.bf16.mxu0 0
    %1015 = vmatpush2.bf16.msra.mxu0 0
    %1016 = vmatprep.subr.bf16.mxu0 0
    %1017 = vmatpush2.bf16.msra.mxu0 0
    %1018 = vmatprep.subr.bf16.mxu0 0
    %1019 = vmatpush2.bf16.msra.mxu0 0
    %1020 = vmatprep.subr.bf16.mxu0 0
    %1021 = vmatpush2.bf16.msra.mxu0 0
    %1022 = vmatprep.subr.bf16.mxu0 0
    %1023 = vmatpush2.bf16.msra.mxu0 0
    %1024 = vmatprep.subr.bf16.mxu0 0
    %1025 = vmatpush2.bf16.msra.mxu0 0
    %1026 = vmatprep.mubr.bf16.mxu0 0
    %1027 = vmatmul.mubr.bf16.gmra.mxu0 %v922
    %v1028 = vpop.f32.mrf.mxu0
    %v1029 = vadd.f32 %v944, %v1028
    %v1030 = vpop.f32.mrf.mxu0
    %v1031 = vpop.f32.mrf.mxu0
    %v1032 = vadd.f32 %v944, %v1031
    %v1033 = vpop.f32.mrf.mxu0
    %1034 = vdwg.mxu0
    %v1035 = vadd.f32 %v786, %v1029
    %v1036 = vadd.f32 %v787, %v1032
    %1037 = vst.msk [vmem:[#allocation5] sm:$0xff] %vm68, %v1035
    %1038 = vst.msk [vmem:[#allocation5 + $0x8] sm:$0xff] %vm68, %v1036
    // Predicated region
    $region66: #{tpu_custom_call.1} parent=1 // pred_check
      _
    $region67: #{tpu_custom_call.1} parent=1 // pred_check_branch
      %1040 = sbr.rel (0) target = $region69
    $region68: #{tpu_custom_call.1} parent=1 // pred_region
      %s1042 = ssub.s32 256, 256
      %1043 = vsyncadd [#allocation4], %s1042
      %s1044 = sshll.u32 [#allocation5], 4
      %s1045 = int_to_ptr.vmem [resolvable:$true] %s1044
      %1050 = dma.vmem_to_hbm [thread:$0]  %s1045, 256, %s15, [#allocation4], 128, 128, 8
    $region69: #{tpu_custom_call.1} parent=1 // pred_fallthru
      _
    // Predicated region
    $region70: #{tpu_custom_call.1} parent=1 // pred_check
      _
    $region71: #{tpu_custom_call.1} parent=1 // pred_check_branch
      %1052 = sbr.rel (0) target = $region73
    $region72: #{tpu_custom_call.1} parent=1 // pred_region
      %1053 = dma.done [#allocation4], 256
    $region73: #{tpu_custom_call.1} parent=1 // pred_fallthru
      _
    %1054 = vsyncpa [#allocation3], 1
    %1055 = vsyncpa [#allocation4], 1

</llo_original>
